<compile_context>
chip_gen: v5e
topology: v5e:2x2
jax: 0.10.0
libtpu: 0.0.40
codegen_flags: <defaults>
</compile_context>

<pallas_src>
import functools

import jax
import jax.numpy as jnp
import numpy as np
from jax import lax
from jax.experimental import pallas as pl
from jax.experimental.pallas import tpu as pltpu

SAMPLE_RATE = 16000
WINDOW = 128          # samples per VAD frame (lane axis)
NUM_FRAMES = 16       # frames in the example signal -> signal length 2048
THRESHOLD = 0.5
MAX_TILE_F = 2048     # frames per scoring tile for long signals (bf16 block = 512 KiB)
MIN_PAD_F = 128       # short clips pad only to this multiple (not a full tile)
GATHER_GROUP = 8      # frames gathered per grid step -> full (8,128) output store


def _round_up(n, m):
    return ((n + m - 1) // m) * m


def _plan_tiles(n_frames):
    """Pick (f_pad, tile_f): small pad for short clips, big tiles for long signals."""
    f_pad = _round_up(max(n_frames, 1), MIN_PAD_F)
    if f_pad <= MAX_TILE_F:
        return f_pad, f_pad
    f_pad = _round_up(f_pad, MAX_TILE_F)
    return f_pad, MAX_TILE_F


# ---------------------------------------------------------------------------
# Kernel 1: per-frame VAD scoring -> lane-dense int32 speech mask.
# ---------------------------------------------------------------------------
def _vad_mask_kernel(frames_ref, w_ref, mask_ref, *, thr):
    # frames: (tile_f, WINDOW) bf16 VMEM
    # w:      (8, WINDOW)      bf16 VMEM (weight row replicated to 8 sublanes for the MXU lhs)
    # mask:   (1, tile_f)      i32 VMEM  (lane-dense: frames on the lane axis)
    #
    # logits[o, f] = sum_d w[o, d] * frames[f, d]  — frame count lands on the MXU N dimension,
    # so the result is already (8, tile_f) lane-dense; no transpose, no sigmoid (threshold and
    # bias are folded into `thr`).  NOTE: a logit within bf16 rounding of `thr` may flip its
    # classification; irrelevant for VAD.
    logits = lax.dot_general(
        w_ref[...], frames_ref[...],
        dimension_numbers=(((1,), (1,)), ((), ())),
        preferred_element_type=jnp.float32,
    )                                                # (8, tile_f) f32
    mask_ref[...] = (logits[0:1, :] > thr).astype(jnp.int32)


def vad_mask(frames_bf, w_blk, thr, tile_f):
    f_pad, win = frames_bf.shape
    assert f_pad % tile_f == 0 and win == WINDOW and tile_f % 128 == 0
    kernel = functools.partial(_vad_mask_kernel, thr=thr)
    return pl.pallas_call(
        kernel,
        out_shape=jax.ShapeDtypeStruct((1, f_pad), jnp.int32),
        grid=(f_pad // tile_f,),
        in_specs=[
            pl.BlockSpec((tile_f, win), lambda i: (i, 0)),   # frame tile (bf16)
            pl.BlockSpec((8, win), lambda i: (0, 0)),        # weights stay resident
        ],
        out_specs=pl.BlockSpec((1, tile_f), lambda i: (0, i)),
        compiler_params=pltpu.CompilerParams(
            # "parallel": megacore-shardable on v7x when the grid has >= 2 tiles.
            dimension_semantics=("parallel",),
        ),
    )(frames_bf, w_blk)


# ---------------------------------------------------------------------------
# Kernel 2: collect_chunks — scalar-prefetch DMA gather, 8 frames per grid step.
# ---------------------------------------------------------------------------
def _gather_group_kernel(idx_ref, *refs):
    # idx_ref:   (max_out,) i32 SMEM scalar-prefetch (consumed by the index_maps, not here)
    # refs[:-1]: GATHER_GROUP refs of shape (1, 1, WINDOW) — gathered frame rows (auto-DMA)
    # refs[-1]:  (GATHER_GROUP, WINDOW) output block -> one full (8,128) unmasked store
    del idx_ref
    out_ref = refs[-1]
    out_ref[...] = jnp.concatenate([r[0] for r in refs[:-1]], axis=0)


def collect_chunks_gather(frames, gather_idx):
    # frames: (n_rows, WINDOW) f32, gather_idx: (max_out,) i32 (fixed length -> static shapes)
    n_rows, win = frames.shape
    max_out = gather_idx.shape[0]
    assert max_out % GATHER_GROUP == 0
    # Keep the dynamically indexed row axis as a *leading* dim so the last-two block dims
    # ((1, WINDOW)) are full-dim / 128-aligned per the (8,128) BlockSpec rule.
    frames3 = frames.reshape(n_rows, 1, win)
    in_specs = [
        pl.BlockSpec((1, 1, win),
                     lambda i, idx, j=j: (idx[GATHER_GROUP * i + j], 0, 0))
        for j in range(GATHER_GROUP)
    ]
    out = pl.pallas_call(
        _gather_group_kernel,
        out_shape=jax.ShapeDtypeStruct((max_out, win), frames.dtype),
        grid_spec=pltpu.PrefetchScalarGridSpec(
            num_scalar_prefetch=1,
            grid=(max_out // GATHER_GROUP,),
            in_specs=in_specs,
            out_specs=pl.BlockSpec((GATHER_GROUP, win), lambda i, idx: (i, 0)),
        ),
        compiler_params=pltpu.CompilerParams(dimension_semantics=("arbitrary",)),
    )(gather_idx, *([frames3] * GATHER_GROUP))
    return out


# ---------------------------------------------------------------------------
# Fused device pipeline: frame -> mask -> prefix-sum compaction -> gather (no host round trip).
# ---------------------------------------------------------------------------
@functools.partial(jax.jit,
                   static_argnames=("thr", "n_frames", "f_pad", "tile_f", "max_out"))
def _vad_pipeline(x, w_blk, *, thr, n_frames, f_pad, tile_f, max_out):
    frames = x[: n_frames * WINDOW].reshape(n_frames, WINDOW).astype(jnp.float32)
    # bf16 copy only for scoring (pad+cast fuse in XLA); gather below reads the f32 frames.
    frames_bf = jnp.pad(frames, ((0, f_pad - n_frames), (0, 0))).astype(jnp.bfloat16)
    mask = vad_mask(frames_bf, w_blk, thr, tile_f)[0, :n_frames]     # (n_frames,) i32
    positions = jnp.cumsum(mask) - 1                                 # output slot per voiced frame
    scatter_to = jnp.where(mask > 0, positions, max_out)             # OOB -> dropped
    gather_idx = jnp.zeros((max_out,), jnp.int32).at[scatter_to].set(
        jnp.arange(n_frames, dtype=jnp.int32), mode="drop")
    chunks = collect_chunks_gather(frames, gather_idx)               # (max_out, WINDOW), static
    return chunks, jnp.sum(mask)


# ---------------------------------------------------------------------------
# VadChunk wrapper (mirrors the PyTorch module's forward semantics).
# ---------------------------------------------------------------------------
class VadChunk:
    """Concatenate VAD chunks from signal (Pallas version)."""

    def __init__(self, w, b, sample_rate=SAMPLE_RATE, threshold=THRESHOLD):
        w_row = jnp.asarray(w, jnp.float32).reshape(1, WINDOW)
        self.w_blk = jnp.tile(w_row, (8, 1)).astype(jnp.bfloat16)    # MXU lhs, 8 sublanes
        b_val = float(np.asarray(b).reshape(-1)[0])
        # sigmoid(frames @ w + b) > t  <=>  frames @ w > logit(t) - b  (strict '>' matches
        # the reference's `prob > threshold`); bias folded into the constant.
        self.thr = float(np.log(threshold / (1.0 - threshold))) - b_val
        self.sample_rate = sample_rate
        self.threshold = threshold

    def _mask_device(self, x, n_frames, f_pad, tile_f):
        frames = x[: n_frames * WINDOW].reshape(n_frames, WINDOW).astype(jnp.float32)
        frames_bf = jnp.pad(frames, ((0, f_pad - n_frames), (0, 0))).astype(jnp.bfloat16)
        return vad_mask(frames_bf, self.w_blk, self.thr, tile_f)[0, :n_frames]

    def get_speech_timestamps(self, x):
        """Host-side timestamp dicts (API parity; __call__ uses the fused device path)."""
        n_frames = x.shape[0] // WINDOW
        if n_frames == 0:
            return []
        f_pad, tile_f = _plan_tiles(n_frames)
        mask = np.asarray(jax.device_get(self._mask_device(x, n_frames, f_pad, tile_f)))
        timestamps, start = [], None
        for i, s in enumerate(mask):
            if s and start is None:
                start = i
            if (not s) and start is not None:
                timestamps.append({"start": start * WINDOW, "end": i * WINDOW})
                start = None
        if start is not None:
            timestamps.append({"start": start * WINDOW, "end": n_frames * WINDOW})
        return timestamps

    def __call__(self, x):
        """Pass input through VAD model layer."""
        n_frames = x.shape[0] // WINDOW
        if n_frames == 0:
            print("No voice activity detected.")
            return jnp.zeros(1)
        f_pad, tile_f = _plan_tiles(n_frames)
        max_out = _round_up(n_frames, GATHER_GROUP)
        chunks, count = _vad_pipeline(
            x, self.w_blk, thr=self.thr, n_frames=n_frames,
            f_pad=f_pad, tile_f=tile_f, max_out=max_out)
        n_voiced = int(count)            # single scalar sync — mirrors the try/except branch
        if n_voiced == 0:
            print("No voice activity detected.")
            return jnp.zeros(1)
        return chunks[:n_voiced].reshape(-1)   # concatenated voiced samples (1-D)


# ---------------------------------------------------------------------------
if __name__ == "__main__":
    key = jax.random.PRNGKey(0)
    k_sig, k_w = jax.random.split(key)

    # Deterministic synthetic signal: low-level noise + "voiced" frames 3..6 and 10..12.
    x = 0.01 * jax.random.normal(k_sig, (NUM_FRAMES * WINDOW,), dtype=jnp.float32)
    speech_profile = jnp.zeros((NUM_FRAMES,), jnp.float32).at[
        jnp.array([3, 4, 5, 6, 10, 11, 12])
    ].set(2.0)
    x = x + jnp.repeat(speech_profile, WINDOW)

    # Deterministic synthetic "pre-trained" VAD params (mean-energy detector + tiny jitter).
    w = jnp.full((WINDOW, 1), 1.0 / WINDOW, jnp.float32) \
        + 0.001 * jax.random.normal(k_w, (WINDOW, 1), dtype=jnp.float32)
    b = jnp.full((1, 1), -0.5, jnp.float32)

    vad = VadChunk(w, b)
    out = jax.block_until_ready(vad(x))

    # Reference check of the full path against plain numpy indexing (gather stays f32-exact).
    frames_ref = np.asarray(x).reshape(NUM_FRAMES, WINDOW)
    expected_idx = np.array([3, 4, 5, 6, 10, 11, 12], dtype=np.int32)
    expected = frames_ref[expected_idx].reshape(-1)
    np.testing.assert_allclose(np.asarray(out), expected, rtol=1e-6, atol=1e-6)

    # Timestamp path sanity check (API parity with get_speech_timestamps).
    ts = vad.get_speech_timestamps(x)
    assert ts == [{"start": 3 * WINDOW, "end": 7 * WINDOW},
                  {"start": 10 * WINDOW, "end": 13 * WINDOW}], ts

    print("KERNEL_OK")
</pallas_src>

<mosaic_0001>
module attributes {stable_mosaic.version = 11 : i64} {
  func.func @_vad_mask_kernel(%arg0: i32, %arg1: memref<128x128xbf16, #tpu.memory_space<vmem>>, %arg2: memref<8x128xbf16, #tpu.memory_space<vmem>>, %arg3: memref<1x128xi32, #tpu.memory_space<vmem>>) attributes {dimension_semantics = [#tpu.dimension_semantics<parallel>], iteration_bounds = array<i64: 1>, scalar_prefetch = 0 : i64, scratch_operands = 0 : i64, tpu.core_type = #tpu.core_type<tc>, window_params = [{transform_indices = @transform_0, window_bounds = array<i64: 128, 128>}, {pipeline_mode = #tpu.pipeline_mode<synchronous>, transform_indices = @transform_1, window_bounds = array<i64: 8, 128>}, {transform_indices = @transform_2, window_bounds = array<i64: 1, 128>}]} {
    %c0 = arith.constant 0 : index
    %c0_0 = arith.constant 0 : index
    %0 = vector.load %arg2[%c0, %c0_0] : memref<8x128xbf16, #tpu.memory_space<vmem>>, vector<8x128xbf16>
    %c0_1 = arith.constant 0 : index
    %c0_2 = arith.constant 0 : index
    %1 = vector.load %arg1[%c0_1, %c0_2] : memref<128x128xbf16, #tpu.memory_space<vmem>>, vector<128x128xbf16>
    %cst = arith.constant dense<0.000000e+00> : vector<8x128xf32>
    %2 = tpu.matmul %0, %1, %cst {dimension_numbers = #tpu.dot_dimension_numbers<[1], [1], [0], [0], [0, 0, 1, 0], [], []>} : vector<8x128xbf16>, vector<128x128xbf16>, vector<8x128xf32> -> vector<8x128xf32>
    %3 = vector.extract_strided_slice %2 {offsets = [0, 0], sizes = [1, 128], strides = [1, 1]} : vector<8x128xf32> to vector<1x128xf32>
    %cst_3 = arith.constant 5.000000e-01 : f32
    %4 = vector.broadcast %cst_3 : f32 to vector<1x128xf32>
    %5 = arith.cmpf ogt, %3, %4 : vector<1x128xf32>
    %6 = arith.extui %5 : vector<1x128xi1> to vector<1x128xi32>
    %c0_4 = arith.constant 0 : index
    %c0_5 = arith.constant 0 : index
    %7 = vector.load %arg3[%c0_4, %c0_5] : memref<1x128xi32, #tpu.memory_space<vmem>>, vector<1x128xi32>
    tpu.vector_store %arg3[%c0_4, %c0_5], %6 {strides = array<i32>} : memref<1x128xi32, #tpu.memory_space<vmem>>, vector<1x128xi32>,
    return
  }
  func.func @transform_0(%arg0: i32) -> (i32, i32) {
    %c0_i32 = arith.constant 0 : i32
    %c0_i32_0 = arith.constant 0 : i32
    return %arg0, %c0_i32 : i32, i32
  }
  func.func @transform_1(%arg0: i32) -> (i32, i32) {
    %c0_i32 = arith.constant 0 : i32
    %c0_i32_0 = arith.constant 0 : i32
    %c0_i32_1 = arith.constant 0 : i32
    return %c0_i32, %c0_i32_0 : i32, i32
  }
  func.func @transform_2(%arg0: i32) -> (i32, i32) {
    %c0_i32 = arith.constant 0 : i32
    %c0_i32_0 = arith.constant 0 : i32
    return %c0_i32, %arg0 : i32, i32
  }
}

module attributes {stable_mosaic.version = 11 : i64} {
  func.func @_gather_group_kernel(%arg0: i32, %arg1: memref<16xi32, #tpu.memory_space<smem>>, %arg2: memref<1x1x128xf32, #tpu.memory_space<vmem>>, %arg3: memref<1x1x128xf32, #tpu.memory_space<vmem>>, %arg4: memref<1x1x128xf32, #tpu.memory_space<vmem>>, %arg5: memref<1x1x128xf32, #tpu.memory_space<vmem>>, %arg6: memref<1x1x128xf32, #tpu.memory_space<vmem>>, %arg7: memref<1x1x128xf32, #tpu.memory_space<vmem>>, %arg8: memref<1x1x128xf32, #tpu.memory_space<vmem>>, %arg9: memref<1x1x128xf32, #tpu.memory_space<vmem>>, %arg10: memref<8x128xf32, #tpu.memory_space<vmem>>) attributes {dimension_semantics = [#tpu.dimension_semantics<arbitrary>], iteration_bounds = array<i64: 2>, scalar_prefetch = 1 : i64, scratch_operands = 0 : i64, tpu.core_type = #tpu.core_type<tc>, window_params = [{transform_indices = @transform_0, window_bounds = array<i64: 1, 1, 128>}, {transform_indices = @transform_1, window_bounds = array<i64: 1, 1, 128>}, {transform_indices = @transform_2, window_bounds = array<i64: 1, 1, 128>}, {transform_indices = @transform_3, window_bounds = array<i64: 1, 1, 128>}, {transform_indices = @transform_4, window_bounds = array<i64: 1, 1, 128>}, {transform_indices = @transform_5, window_bounds = array<i64: 1, 1, 128>}, {transform_indices = @transform_6, window_bounds = array<i64: 1, 1, 128>}, {transform_indices = @transform_7, window_bounds = array<i64: 1, 1, 128>}, {transform_indices = @transform_8, window_bounds = array<i64: 8, 128>}]} {
    %c0 = arith.constant 0 : index
    %c0_0 = arith.constant 0 : index
    %c0_1 = arith.constant 0 : index
    %0 = vector.load %arg2[%c0, %c0_0, %c0_1] : memref<1x1x128xf32, #tpu.memory_space<vmem>>, vector<1x1x128xf32>
    %1 = vector.shape_cast %0 : vector<1x1x128xf32> to vector<1x128xf32>
    %c0_2 = arith.constant 0 : index
    %c0_3 = arith.constant 0 : index
    %c0_4 = arith.constant 0 : index
    %2 = vector.load %arg3[%c0_2, %c0_3, %c0_4] : memref<1x1x128xf32, #tpu.memory_space<vmem>>, vector<1x1x128xf32>
    %3 = vector.shape_cast %2 : vector<1x1x128xf32> to vector<1x128xf32>
    %c0_5 = arith.constant 0 : index
    %c0_6 = arith.constant 0 : index
    %c0_7 = arith.constant 0 : index
    %4 = vector.load %arg4[%c0_5, %c0_6, %c0_7] : memref<1x1x128xf32, #tpu.memory_space<vmem>>, vector<1x1x128xf32>
    %5 = vector.shape_cast %4 : vector<1x1x128xf32> to vector<1x128xf32>
    %c0_8 = arith.constant 0 : index
    %c0_9 = arith.constant 0 : index
    %c0_10 = arith.constant 0 : index
    %6 = vector.load %arg5[%c0_8, %c0_9, %c0_10] : memref<1x1x128xf32, #tpu.memory_space<vmem>>, vector<1x1x128xf32>
    %7 = vector.shape_cast %6 : vector<1x1x128xf32> to vector<1x128xf32>
    %c0_11 = arith.constant 0 : index
    %c0_12 = arith.constant 0 : index
    %c0_13 = arith.constant 0 : index
    %8 = vector.load %arg6[%c0_11, %c0_12, %c0_13] : memref<1x1x128xf32, #tpu.memory_space<vmem>>, vector<1x1x128xf32>
    %9 = vector.shape_cast %8 : vector<1x1x128xf32> to vector<1x128xf32>
    %c0_14 = arith.constant 0 : index
    %c0_15 = arith.constant 0 : index
    %c0_16 = arith.constant 0 : index
    %10 = vector.load %arg7[%c0_14, %c0_15, %c0_16] : memref<1x1x128xf32, #tpu.memory_space<vmem>>, vector<1x1x128xf32>
    %11 = vector.shape_cast %10 : vector<1x1x128xf32> to vector<1x128xf32>
    %c0_17 = arith.constant 0 : index
    %c0_18 = arith.constant 0 : index
    %c0_19 = arith.constant 0 : index
    %12 = vector.load %arg8[%c0_17, %c0_18, %c0_19] : memref<1x1x128xf32, #tpu.memory_space<vmem>>, vector<1x1x128xf32>
    %13 = vector.shape_cast %12 : vector<1x1x128xf32> to vector<1x128xf32>
    %c0_20 = arith.constant 0 : index
    %c0_21 = arith.constant 0 : index
    %c0_22 = arith.constant 0 : index
    %14 = vector.load %arg9[%c0_20, %c0_21, %c0_22] : memref<1x1x128xf32, #tpu.memory_space<vmem>>, vector<1x1x128xf32>
    %15 = vector.shape_cast %14 : vector<1x1x128xf32> to vector<1x128xf32>
    %16 = tpu.concatenate %1, %3, %5, %7, %9, %11, %13, %15 in 0 : vector<1x128xf32>, vector<1x128xf32>, vector<1x128xf32>, vector<1x128xf32>, vector<1x128xf32>, vector<1x128xf32>, vector<1x128xf32>, vector<1x128xf32> -> vector<8x128xf32>
    %c0_23 = arith.constant 0 : index
    %c0_24 = arith.constant 0 : index
    %17 = vector.load %arg10[%c0_23, %c0_24] : memref<8x128xf32, #tpu.memory_space<vmem>>, vector<8x128xf32>
    tpu.vector_store %arg10[%c0_23, %c0_24], %16 {strides = array<i32>} : memref<8x128xf32, #tpu.memory_space<vmem>>, vector<8x128xf32>,
    return
  }
  func.func @transform_0(%arg0: i32, %arg1: memref<16xi32, #tpu.memory_space<smem>>) -> (i32, i32, i32) {
    %c8_i32 = arith.constant 8 : i32
    %0 = arith.muli %c8_i32, %arg0 : i32
    %c0_i32 = arith.constant 0 : i32
    %1 = arith.addi %0, %c0_i32 : i32
    %2 = arith.index_cast %1 : i32 to index
    %3 = memref.load %arg1[%2] : memref<16xi32, #tpu.memory_space<smem>>
    %c0_i32_0 = arith.constant 0 : i32
    %c0_i32_1 = arith.constant 0 : i32
    %c0_i32_2 = arith.constant 0 : i32
    return %3, %c0_i32_0, %c0_i32_1 : i32, i32, i32
  }
  func.func @transform_1(%arg0: i32, %arg1: memref<16xi32, #tpu.memory_space<smem>>) -> (i32, i32, i32) {
    %c8_i32 = arith.constant 8 : i32
    %0 = arith.muli %c8_i32, %arg0 : i32
    %c1_i32 = arith.constant 1 : i32
    %1 = arith.addi %0, %c1_i32 : i32
    %2 = arith.index_cast %1 : i32 to index
    %3 = memref.load %arg1[%2] : memref<16xi32, #tpu.memory_space<smem>>
    %c0_i32 = arith.constant 0 : i32
    %c0_i32_0 = arith.constant 0 : i32
    %c0_i32_1 = arith.constant 0 : i32
    return %3, %c0_i32, %c0_i32_0 : i32, i32, i32
  }
  func.func @transform_2(%arg0: i32, %arg1: memref<16xi32, #tpu.memory_space<smem>>) -> (i32, i32, i32) {
    %c8_i32 = arith.constant 8 : i32
    %0 = arith.muli %c8_i32, %arg0 : i32
    %c2_i32 = arith.constant 2 : i32
    %1 = arith.addi %0, %c2_i32 : i32
    %2 = arith.index_cast %1 : i32 to index
    %3 = memref.load %arg1[%2] : memref<16xi32, #tpu.memory_space<smem>>
    %c0_i32 = arith.constant 0 : i32
    %c0_i32_0 = arith.constant 0 : i32
    %c0_i32_1 = arith.constant 0 : i32
    return %3, %c0_i32, %c0_i32_0 : i32, i32, i32
  }
  func.func @transform_3(%arg0: i32, %arg1: memref<16xi32, #tpu.memory_space<smem>>) -> (i32, i32, i32) {
    %c8_i32 = arith.constant 8 : i32
    %0 = arith.muli %c8_i32, %arg0 : i32
    %c3_i32 = arith.constant 3 : i32
    %1 = arith.addi %0, %c3_i32 : i32
    %2 = arith.index_cast %1 : i32 to index
    %3 = memref.load %arg1[%2] : memref<16xi32, #tpu.memory_space<smem>>
    %c0_i32 = arith.constant 0 : i32
    %c0_i32_0 = arith.constant 0 : i32
    %c0_i32_1 = arith.constant 0 : i32
    return %3, %c0_i32, %c0_i32_0 : i32, i32, i32
  }
  func.func @transform_4(%arg0: i32, %arg1: memref<16xi32, #tpu.memory_space<smem>>) -> (i32, i32, i32) {
    %c8_i32 = arith.constant 8 : i32
    %0 = arith.muli %c8_i32, %arg0 : i32
    %c4_i32 = arith.constant 4 : i32
    %1 = arith.addi %0, %c4_i32 : i32
    %2 = arith.index_cast %1 : i32 to index
    %3 = memref.load %arg1[%2] : memref<16xi32, #tpu.memory_space<smem>>
    %c0_i32 = arith.constant 0 : i32
    %c0_i32_0 = arith.constant 0 : i32
    %c0_i32_1 = arith.constant 0 : i32
    return %3, %c0_i32, %c0_i32_0 : i32, i32, i32
  }
  func.func @transform_5(%arg0: i32, %arg1: memref<16xi32, #tpu.memory_space<smem>>) -> (i32, i32, i32) {
    %c8_i32 = arith.constant 8 : i32
    %0 = arith.muli %c8_i32, %arg0 : i32
    %c5_i32 = arith.constant 5 : i32
    %1 = arith.addi %0, %c5_i32 : i32
    %2 = arith.index_cast %1 : i32 to index
    %3 = memref.load %arg1[%2] : memref<16xi32, #tpu.memory_space<smem>>
    %c0_i32 = arith.constant 0 : i32
    %c0_i32_0 = arith.constant 0 : i32
    %c0_i32_1 = arith.constant 0 : i32
    return %3, %c0_i32, %c0_i32_0 : i32, i32, i32
  }
  func.func @transform_6(%arg0: i32, %arg1: memref<16xi32, #tpu.memory_space<smem>>) -> (i32, i32, i32) {
    %c8_i32 = arith.constant 8 : i32
    %0 = arith.muli %c8_i32, %arg0 : i32
    %c6_i32 = arith.constant 6 : i32
    %1 = arith.addi %0, %c6_i32 : i32
    %2 = arith.index_cast %1 : i32 to index
    %3 = memref.load %arg1[%2] : memref<16xi32, #tpu.memory_space<smem>>
    %c0_i32 = arith.constant 0 : i32
    %c0_i32_0 = arith.constant 0 : i32
    %c0_i32_1 = arith.constant 0 : i32
    return %3, %c0_i32, %c0_i32_0 : i32, i32, i32
  }
  func.func @transform_7(%arg0: i32, %arg1: memref<16xi32, #tpu.memory_space<smem>>) -> (i32, i32, i32) {
    %c8_i32 = arith.constant 8 : i32
    %0 = arith.muli %c8_i32, %arg0 : i32
    %c7_i32 = arith.constant 7 : i32
    %1 = arith.addi %0, %c7_i32 : i32
    %2 = arith.index_cast %1 : i32 to index
    %3 = memref.load %arg1[%2] : memref<16xi32, #tpu.memory_space<smem>>
    %c0_i32 = arith.constant 0 : i32
    %c0_i32_0 = arith.constant 0 : i32
    %c0_i32_1 = arith.constant 0 : i32
    return %3, %c0_i32, %c0_i32_0 : i32, i32, i32
  }
  func.func @transform_8(%arg0: i32, %arg1: memref<16xi32, #tpu.memory_space<smem>>) -> (i32, i32) {
    %c0_i32 = arith.constant 0 : i32
    %c0_i32_0 = arith.constant 0 : i32
    return %arg0, %c0_i32 : i32, i32
  }
}

</mosaic_0001>

<llo_original>
// kernel: _vad_pipeline.3
$region0: #{_vad_pipeline.3}
  #allocation0 [shape = 'u32[]', space=smem, size = 0x4, offset = 0x4, fixed_abs, tag = 'smem constant byte address 0x4 - core index']
  #allocation1 [shape = 'u32[72,128]{1,0:T(1,128)}', space=vmem, size = 0x9000, scoped, tag = 'internal scratch']
  #allocation2 [shape = 's32[1]{0}', space=sflag, size = 0x4, scoped, tag = 'scoped memory for _vad_pipeline.3']
  #allocation3 [shape = 'u8[512]{0}', space=smem, size = 0x200, scoped, tag = 'prefetched SMEM operand 0']
  %s0 = inlined_call_operand.vmem [shape: s32[16], index: 0, kind: input, shape index: {}]
  %s1 = inlined_call_operand.vmem [shape: f32[16,1,128], index: 1, kind: input, shape index: {}, may-alias: {1,2,3,4,5,6,7,8}]
  %s2 = inlined_call_operand.vmem [shape: f32[16,1,128], index: 2, kind: input, shape index: {}, may-alias: {1,2,3,4,5,6,7,8}]
  %s3 = inlined_call_operand.vmem [shape: f32[16,1,128], index: 3, kind: input, shape index: {}, may-alias: {1,2,3,4,5,6,7,8}]
  %s4 = inlined_call_operand.vmem [shape: f32[16,1,128], index: 4, kind: input, shape index: {}, may-alias: {1,2,3,4,5,6,7,8}]
  %s5 = inlined_call_operand.vmem [shape: f32[16,1,128], index: 5, kind: input, shape index: {}, may-alias: {1,2,3,4,5,6,7,8}]
  %s6 = inlined_call_operand.vmem [shape: f32[16,1,128], index: 6, kind: input, shape index: {}, may-alias: {1,2,3,4,5,6,7,8}]
  %s7 = inlined_call_operand.vmem [shape: f32[16,1,128], index: 7, kind: input, shape index: {}, may-alias: {1,2,3,4,5,6,7,8}]
  %s8 = inlined_call_operand.vmem [shape: f32[16,1,128], index: 8, kind: input, shape index: {}, may-alias: {1,2,3,4,5,6,7,8}]
  %s9 = inlined_call_operand.hbm [shape: f32[16,128], index: 9, kind: output, shape index: {}]
  %s10 = sld [smem:[#allocation0]]
  $region65: #{_vad_pipeline.3} parent=0
    _
  %s12 = ssub.s32 1, %s10
  %s13 = scalar_select 0, %s12, %s10
  %s15 = sshll.u32 %s0, 4
  %s16 = int_to_ptr.vmem [resolvable:$true] %s15
  %18 = dma.vmem_to_smem %s16, 16, [#allocation3], [#allocation2]
  %20 = dma.done [#allocation2], 16
  %21 = sfence
  $region1: #{_vad_pipeline.3} parent=0
    #allocation4 [shape = 'u8[8192]{0}', space=vmem, size = 0x2000, scoped, tag = 'output window, operand 0']
    #allocation5 [shape = 's32[2]{0}', space=sflag, size = 0x8, scoped, tag = 'scoped memory for _vad_pipeline.3']
    %22 = vsyncpa [#allocation5], 0
    %s23 = scalar_lea.sflag [#allocation5], 1
    %24 = vsyncpa %s23, 0
    loop: start=0, step=1, limit=4
    $region2: #{_vad_pipeline.3} parent=1 // loop_pre_header
      _
    $region3: #{_vad_pipeline.3} parent=1 // loop_header
      %s26 = sphi 0, %s30
      %p27 = scmp.ge.s32.totalorder %s26, 4
      %s40 = sphi 0, %s42
      %s43 = sphi 0, %s40
      %s44 = sphi 0, %s43
      %s60 = sphi 0, %s44
      %s72 = sphi 0, %s74
      %s75 = sphi 0, %s72
      %s76 = sphi 0, %s75
      %s92 = sphi 0, %s76
      %s104 = sphi 0, %s106
      %s107 = sphi 0, %s104
      %s108 = sphi 0, %s107
      %s124 = sphi 0, %s108
      %s136 = sphi 0, %s138
      %s139 = sphi 0, %s136
      %s140 = sphi 0, %s139
      %s156 = sphi 0, %s140
      %s168 = sphi 0, %s170
      %s171 = sphi 0, %s168
      %s172 = sphi 0, %s171
      %s188 = sphi 0, %s172
      %s200 = sphi 0, %s202
      %s203 = sphi 0, %s200
      %s204 = sphi 0, %s203
      %s220 = sphi 0, %s204
      %s232 = sphi 0, %s234
      %s235 = sphi 0, %s232
      %s236 = sphi 0, %s235
      %s252 = sphi 0, %s236
      %s264 = sphi 0, %s266
      %s267 = sphi 0, %s264
      %s268 = sphi 0, %s267
      %s284 = sphi 0, %s268
      %s290 = sphi 0, %s292
      %s293 = sphi 0, %s290
      %s294 = sphi 0, %s293
      %s310 = sphi 0, %s294
    $region4: #{_vad_pipeline.3} parent=1 // loop_header_branch
      %29 = sbr.rel (%p27) target = $region8
    $region5: #{_vad_pipeline.3} parent=1 // loop_body
      %s31 = ssub.s32 %s26, 1
      %s32 = ssub.s32 %s26, 2
      %s33 = sadd.s32 %s26, 1
      %s34 = smul.u32 %s26, 8
      %s35 = sld [smem:[#allocation3 + %s34]]
      %s36 = smul.u32 %s33, 8
      %s37 = sld [smem:[#allocation3 + %s36]]
      %s38 = ssub.s32 %s35, %s37
      %p39 = scmp.eq.s32.totalorder %s38, 0
      %s41 = sadd.s32 %s40, 1
      %s42 = scalar_select %p39, %s40, %s41
      %p45 = pneg %p39
      %p46 = scmp.eq.s32.totalorder %s26, 1
      %p47 = por %p45, %p46
      %p48 = scmp.ne.s32.totalorder %s40, %s43
      %p49 = scmp.eq.s32.totalorder %s26, 0
      %p50 = por %p48, %p49
      %p51 = scmp.ne.s32.totalorder %s40, %s43
      %p52 = scmp.eq.s32.totalorder %s31, 1
      %p53 = por %p51, %p52
      %p54 = scmp.ne.s32.totalorder %s43, %s44
      %p55 = scmp.eq.s32.totalorder %s31, 0
      %p56 = por %p54, %p55
      %p57 = scmp.ne.s32.totalorder %s43, %s44
      %p58 = scmp.eq.s32.totalorder %s32, 1
      %p59 = por %p57, %p58
      %p61 = scmp.ne.s32.totalorder %s44, %s60
      %p62 = scmp.eq.s32.totalorder %s32, 0
      %p63 = por %p61, %p62
      %s64 = smul.u32 %s26, 8
      %s65 = sadd.s32 %s64, 1
      %s66 = sld [smem:[#allocation3 + %s65]]
      %s67 = smul.u32 %s33, 8
      %s68 = sadd.s32 %s67, 1
      %s69 = sld [smem:[#allocation3 + %s68]]
      %s70 = ssub.s32 %s66, %s69
      %p71 = scmp.eq.s32.totalorder %s70, 0
      %s73 = sadd.s32 %s72, 1
      %s74 = scalar_select %p71, %s72, %s73
      %p77 = pneg %p71
      %p78 = scmp.eq.s32.totalorder %s26, 1
      %p79 = por %p77, %p78
      %p80 = scmp.ne.s32.totalorder %s72, %s75
      %p81 = scmp.eq.s32.totalorder %s26, 0
      %p82 = por %p80, %p81
      %p83 = scmp.ne.s32.totalorder %s72, %s75
      %p84 = scmp.eq.s32.totalorder %s31, 1
      %p85 = por %p83, %p84
      %p86 = scmp.ne.s32.totalorder %s75, %s76
      %p87 = scmp.eq.s32.totalorder %s31, 0
      %p88 = por %p86, %p87
      %p89 = scmp.ne.s32.totalorder %s75, %s76
      %p90 = scmp.eq.s32.totalorder %s32, 1
      %p91 = por %p89, %p90
      %p93 = scmp.ne.s32.totalorder %s76, %s92
      %p94 = scmp.eq.s32.totalorder %s32, 0
      %p95 = por %p93, %p94
      %s96 = smul.u32 %s26, 8
      %s97 = sadd.s32 %s96, 2
      %s98 = sld [smem:[#allocation3 + %s97]]
      %s99 = smul.u32 %s33, 8
      %s100 = sadd.s32 %s99, 2
      %s101 = sld [smem:[#allocation3 + %s100]]
      %s102 = ssub.s32 %s98, %s101
      %p103 = scmp.eq.s32.totalorder %s102, 0
      %s105 = sadd.s32 %s104, 1
      %s106 = scalar_select %p103, %s104, %s105
      %p109 = pneg %p103
      %p110 = scmp.eq.s32.totalorder %s26, 1
      %p111 = por %p109, %p110
      %p112 = scmp.ne.s32.totalorder %s104, %s107
      %p113 = scmp.eq.s32.totalorder %s26, 0
      %p114 = por %p112, %p113
      %p115 = scmp.ne.s32.totalorder %s104, %s107
      %p116 = scmp.eq.s32.totalorder %s31, 1
      %p117 = por %p115, %p116
      %p118 = scmp.ne.s32.totalorder %s107, %s108
      %p119 = scmp.eq.s32.totalorder %s31, 0
      %p120 = por %p118, %p119
      %p121 = scmp.ne.s32.totalorder %s107, %s108
      %p122 = scmp.eq.s32.totalorder %s32, 1
      %p123 = por %p121, %p122
      %p125 = scmp.ne.s32.totalorder %s108, %s124
      %p126 = scmp.eq.s32.totalorder %s32, 0
      %p127 = por %p125, %p126
      %s128 = smul.u32 %s26, 8
      %s129 = sadd.s32 %s128, 3
      %s130 = sld [smem:[#allocation3 + %s129]]
      %s131 = smul.u32 %s33, 8
      %s132 = sadd.s32 %s131, 3
      %s133 = sld [smem:[#allocation3 + %s132]]
      %s134 = ssub.s32 %s130, %s133
      %p135 = scmp.eq.s32.totalorder %s134, 0
      %s137 = sadd.s32 %s136, 1
      %s138 = scalar_select %p135, %s136, %s137
      %p141 = pneg %p135
      %p142 = scmp.eq.s32.totalorder %s26, 1
      %p143 = por %p141, %p142
      %p144 = scmp.ne.s32.totalorder %s136, %s139
      %p145 = scmp.eq.s32.totalorder %s26, 0
      %p146 = por %p144, %p145
      %p147 = scmp.ne.s32.totalorder %s136, %s139
      %p148 = scmp.eq.s32.totalorder %s31, 1
      %p149 = por %p147, %p148
      %p150 = scmp.ne.s32.totalorder %s139, %s140
      %p151 = scmp.eq.s32.totalorder %s31, 0
      %p152 = por %p150, %p151
      %p153 = scmp.ne.s32.totalorder %s139, %s140
      %p154 = scmp.eq.s32.totalorder %s32, 1
      %p155 = por %p153, %p154
      %p157 = scmp.ne.s32.totalorder %s140, %s156
      %p158 = scmp.eq.s32.totalorder %s32, 0
      %p159 = por %p157, %p158
      %s160 = smul.u32 %s26, 8
      %s161 = sadd.s32 %s160, 4
      %s162 = sld [smem:[#allocation3 + %s161]]
      %s163 = smul.u32 %s33, 8
      %s164 = sadd.s32 %s163, 4
      %s165 = sld [smem:[#allocation3 + %s164]]
      %s166 = ssub.s32 %s162, %s165
      %p167 = scmp.eq.s32.totalorder %s166, 0
      %s169 = sadd.s32 %s168, 1
      %s170 = scalar_select %p167, %s168, %s169
      %p173 = pneg %p167
      %p174 = scmp.eq.s32.totalorder %s26, 1
      %p175 = por %p173, %p174
      %p176 = scmp.ne.s32.totalorder %s168, %s171
      %p177 = scmp.eq.s32.totalorder %s26, 0
      %p178 = por %p176, %p177
      %p179 = scmp.ne.s32.totalorder %s168, %s171
      %p180 = scmp.eq.s32.totalorder %s31, 1
      %p181 = por %p179, %p180
      %p182 = scmp.ne.s32.totalorder %s171, %s172
      %p183 = scmp.eq.s32.totalorder %s31, 0
      %p184 = por %p182, %p183
      %p185 = scmp.ne.s32.totalorder %s171, %s172
      %p186 = scmp.eq.s32.totalorder %s32, 1
      %p187 = por %p185, %p186
      %p189 = scmp.ne.s32.totalorder %s172, %s188
      %p190 = scmp.eq.s32.totalorder %s32, 0
      %p191 = por %p189, %p190
      %s192 = smul.u32 %s26, 8
      %s193 = sadd.s32 %s192, 5
      %s194 = sld [smem:[#allocation3 + %s193]]
      %s195 = smul.u32 %s33, 8
      %s196 = sadd.s32 %s195, 5
      %s197 = sld [smem:[#allocation3 + %s196]]
      %s198 = ssub.s32 %s194, %s197
      %p199 = scmp.eq.s32.totalorder %s198, 0
      %s201 = sadd.s32 %s200, 1
      %s202 = scalar_select %p199, %s200, %s201
      %p205 = pneg %p199
      %p206 = scmp.eq.s32.totalorder %s26, 1
      %p207 = por %p205, %p206
      %p208 = scmp.ne.s32.totalorder %s200, %s203
      %p209 = scmp.eq.s32.totalorder %s26, 0
      %p210 = por %p208, %p209
      %p211 = scmp.ne.s32.totalorder %s200, %s203
      %p212 = scmp.eq.s32.totalorder %s31, 1
      %p213 = por %p211, %p212
      %p214 = scmp.ne.s32.totalorder %s203, %s204
      %p215 = scmp.eq.s32.totalorder %s31, 0
      %p216 = por %p214, %p215
      %p217 = scmp.ne.s32.totalorder %s203, %s204
      %p218 = scmp.eq.s32.totalorder %s32, 1
      %p219 = por %p217, %p218
      %p221 = scmp.ne.s32.totalorder %s204, %s220
      %p222 = scmp.eq.s32.totalorder %s32, 0
      %p223 = por %p221, %p222
      %s224 = smul.u32 %s26, 8
      %s225 = sadd.s32 %s224, 6
      %s226 = sld [smem:[#allocation3 + %s225]]
      %s227 = smul.u32 %s33, 8
      %s228 = sadd.s32 %s227, 6
      %s229 = sld [smem:[#allocation3 + %s228]]
      %s230 = ssub.s32 %s226, %s229
      %p231 = scmp.eq.s32.totalorder %s230, 0
      %s233 = sadd.s32 %s232, 1
      %s234 = scalar_select %p231, %s232, %s233
      %p237 = pneg %p231
      %p238 = scmp.eq.s32.totalorder %s26, 1
      %p239 = por %p237, %p238
      %p240 = scmp.ne.s32.totalorder %s232, %s235
      %p241 = scmp.eq.s32.totalorder %s26, 0
      %p242 = por %p240, %p241
      %p243 = scmp.ne.s32.totalorder %s232, %s235
      %p244 = scmp.eq.s32.totalorder %s31, 1
      %p245 = por %p243, %p244
      %p246 = scmp.ne.s32.totalorder %s235, %s236
      %p247 = scmp.eq.s32.totalorder %s31, 0
      %p248 = por %p246, %p247
      %p249 = scmp.ne.s32.totalorder %s235, %s236
      %p250 = scmp.eq.s32.totalorder %s32, 1
      %p251 = por %p249, %p250
      %p253 = scmp.ne.s32.totalorder %s236, %s252
      %p254 = scmp.eq.s32.totalorder %s32, 0
      %p255 = por %p253, %p254
      %s256 = smul.u32 %s26, 8
      %s257 = sadd.s32 %s256, 7
      %s258 = sld [smem:[#allocation3 + %s257]]
      %s259 = smul.u32 %s33, 8
      %s260 = sadd.s32 %s259, 7
      %s261 = sld [smem:[#allocation3 + %s260]]
      %s262 = ssub.s32 %s258, %s261
      %p263 = scmp.eq.s32.totalorder %s262, 0
      %s265 = sadd.s32 %s264, 1
      %s266 = scalar_select %p263, %s264, %s265
      %p269 = pneg %p263
      %p270 = scmp.eq.s32.totalorder %s26, 1
      %p271 = por %p269, %p270
      %p272 = scmp.ne.s32.totalorder %s264, %s267
      %p273 = scmp.eq.s32.totalorder %s26, 0
      %p274 = por %p272, %p273
      %p275 = scmp.ne.s32.totalorder %s264, %s267
      %p276 = scmp.eq.s32.totalorder %s31, 1
      %p277 = por %p275, %p276
      %p278 = scmp.ne.s32.totalorder %s267, %s268
      %p279 = scmp.eq.s32.totalorder %s31, 0
      %p280 = por %p278, %p279
      %p281 = scmp.ne.s32.totalorder %s267, %s268
      %p282 = scmp.eq.s32.totalorder %s32, 1
      %p283 = por %p281, %p282
      %p285 = scmp.ne.s32.totalorder %s268, %s284
      %p286 = scmp.eq.s32.totalorder %s32, 0
      %p287 = por %p285, %p286
      %s288 = ssub.s32 %s26, %s33
      %p289 = scmp.eq.s32.totalorder %s288, 0
      %s291 = sadd.s32 %s290, 1
      %s292 = scalar_select %p289, %s290, %s291
      %p295 = pneg %p289
      %p296 = scmp.eq.s32.totalorder %s26, 1
      %p297 = por %p295, %p296
      %p298 = scmp.ne.s32.totalorder %s290, %s293
      %p299 = scmp.eq.s32.totalorder %s26, 0
      %p300 = por %p298, %p299
      %p301 = scmp.ne.s32.totalorder %s290, %s293
      %p302 = scmp.eq.s32.totalorder %s31, 1
      %p303 = por %p301, %p302
      %p304 = scmp.ne.s32.totalorder %s293, %s294
      %p305 = scmp.eq.s32.totalorder %s31, 0
      %p306 = por %p304, %p305
      %p307 = scmp.ne.s32.totalorder %s293, %s294
      %p308 = scmp.eq.s32.totalorder %s32, 1
      %p309 = por %p307, %p308
      %p311 = scmp.ne.s32.totalorder %s294, %s310
      %p312 = scmp.eq.s32.totalorder %s32, 0
      %p313 = por %p311, %p312
      %p314 = scmp.le.s32.totalorder 1, %s26
      %p315 = scmp.lt.s32.totalorder %s26, 3
      %p316 = pnand %p314, %p315
      %p317 = pneg %p316
      // Predicated region
      $region9: #{_vad_pipeline.3} parent=5 // pred_check
        _
      $region10: #{_vad_pipeline.3} parent=5 // pred_check_branch
        %319 = sbr.rel (%p316) target = $region12
      $region11: #{_vad_pipeline.3} parent=5 // pred_region
        %s320 = ssub.s32 %s26, 1
      $region12: #{_vad_pipeline.3} parent=5 // pred_fallthru
        _
      %p321 = scmp.lt.s32.totalorder %s26, 2
      // Predicated region
      $region13: #{_vad_pipeline.3} parent=5 // pred_check
        %p322 = pneg %p321
      $region14: #{_vad_pipeline.3} parent=5 // pred_check_branch
        %324 = sbr.rel (%p322) target = $region16
      $region15: #{_vad_pipeline.3} parent=5 // pred_region
        // Predicated region
        $region17: #{_vad_pipeline.3} parent=15 // pred_check
          %p325 = pneg %p50
        $region18: #{_vad_pipeline.3} parent=15 // pred_check_branch
          %327 = sbr.rel (%p325) target = $region20
        $region19: #{_vad_pipeline.3} parent=15 // pred_region
          %s328 = smul.u32 %s26, 8
          %s329 = sld [smem:[#allocation3 + %s328]]
          %p330 = scmp.lt.s32.totalorder %s329, 15
          %s331 = scalar_select %p330, %s329, 15
          %s332 = scalar_lea.vmem %s1, %s331
          %s333 = smul.u32 %s26, 8
          %s334 = sld [smem:[#allocation3 + %s333]]
        $region20: #{_vad_pipeline.3} parent=15 // pred_fallthru
          _
        // Predicated region
        $region21: #{_vad_pipeline.3} parent=15 // pred_check
          %p335 = pneg %p82
        $region22: #{_vad_pipeline.3} parent=15 // pred_check_branch
          %337 = sbr.rel (%p335) target = $region24
        $region23: #{_vad_pipeline.3} parent=15 // pred_region
          %s338 = smul.u32 %s26, 8
          %s339 = sadd.s32 %s338, 1
          %s340 = sld [smem:[#allocation3 + %s339]]
          %p341 = scmp.lt.s32.totalorder %s340, 15
          %s342 = scalar_select %p341, %s340, 15
          %s343 = scalar_lea.vmem %s2, %s342
          %s344 = smul.u32 %s26, 8
          %s345 = sadd.s32 %s344, 1
          %s346 = sld [smem:[#allocation3 + %s345]]
        $region24: #{_vad_pipeline.3} parent=15 // pred_fallthru
          _
        // Predicated region
        $region25: #{_vad_pipeline.3} parent=15 // pred_check
          %p347 = pneg %p114
        $region26: #{_vad_pipeline.3} parent=15 // pred_check_branch
          %349 = sbr.rel (%p347) target = $region28
        $region27: #{_vad_pipeline.3} parent=15 // pred_region
          %s350 = smul.u32 %s26, 8
          %s351 = sadd.s32 %s350, 2
          %s352 = sld [smem:[#allocation3 + %s351]]
          %p353 = scmp.lt.s32.totalorder %s352, 15
          %s354 = scalar_select %p353, %s352, 15
          %s355 = scalar_lea.vmem %s3, %s354
          %s356 = smul.u32 %s26, 8
          %s357 = sadd.s32 %s356, 2
          %s358 = sld [smem:[#allocation3 + %s357]]
        $region28: #{_vad_pipeline.3} parent=15 // pred_fallthru
          _
        // Predicated region
        $region29: #{_vad_pipeline.3} parent=15 // pred_check
          %p359 = pneg %p146
        $region30: #{_vad_pipeline.3} parent=15 // pred_check_branch
          %361 = sbr.rel (%p359) target = $region32
        $region31: #{_vad_pipeline.3} parent=15 // pred_region
          %s362 = smul.u32 %s26, 8
          %s363 = sadd.s32 %s362, 3
          %s364 = sld [smem:[#allocation3 + %s363]]
          %p365 = scmp.lt.s32.totalorder %s364, 15
          %s366 = scalar_select %p365, %s364, 15
          %s367 = scalar_lea.vmem %s4, %s366
          %s368 = smul.u32 %s26, 8
          %s369 = sadd.s32 %s368, 3
          %s370 = sld [smem:[#allocation3 + %s369]]
        $region32: #{_vad_pipeline.3} parent=15 // pred_fallthru
          _
        // Predicated region
        $region33: #{_vad_pipeline.3} parent=15 // pred_check
          %p371 = pneg %p178
        $region34: #{_vad_pipeline.3} parent=15 // pred_check_branch
          %373 = sbr.rel (%p371) target = $region36
        $region35: #{_vad_pipeline.3} parent=15 // pred_region
          %s374 = smul.u32 %s26, 8
          %s375 = sadd.s32 %s374, 4
          %s376 = sld [smem:[#allocation3 + %s375]]
          %p377 = scmp.lt.s32.totalorder %s376, 15
          %s378 = scalar_select %p377, %s376, 15
          %s379 = scalar_lea.vmem %s5, %s378
          %s380 = smul.u32 %s26, 8
          %s381 = sadd.s32 %s380, 4
          %s382 = sld [smem:[#allocation3 + %s381]]
        $region36: #{_vad_pipeline.3} parent=15 // pred_fallthru
          _
        // Predicated region
        $region37: #{_vad_pipeline.3} parent=15 // pred_check
          %p383 = pneg %p210
        $region38: #{_vad_pipeline.3} parent=15 // pred_check_branch
          %385 = sbr.rel (%p383) target = $region40
        $region39: #{_vad_pipeline.3} parent=15 // pred_region
          %s386 = smul.u32 %s26, 8
          %s387 = sadd.s32 %s386, 5
          %s388 = sld [smem:[#allocation3 + %s387]]
          %p389 = scmp.lt.s32.totalorder %s388, 15
          %s390 = scalar_select %p389, %s388, 15
          %s391 = scalar_lea.vmem %s6, %s390
          %s392 = smul.u32 %s26, 8
          %s393 = sadd.s32 %s392, 5
          %s394 = sld [smem:[#allocation3 + %s393]]
        $region40: #{_vad_pipeline.3} parent=15 // pred_fallthru
          _
        // Predicated region
        $region41: #{_vad_pipeline.3} parent=15 // pred_check
          %p395 = pneg %p242
        $region42: #{_vad_pipeline.3} parent=15 // pred_check_branch
          %397 = sbr.rel (%p395) target = $region44
        $region43: #{_vad_pipeline.3} parent=15 // pred_region
          %s398 = smul.u32 %s26, 8
          %s399 = sadd.s32 %s398, 6
          %s400 = sld [smem:[#allocation3 + %s399]]
          %p401 = scmp.lt.s32.totalorder %s400, 15
          %s402 = scalar_select %p401, %s400, 15
          %s403 = scalar_lea.vmem %s7, %s402
          %s404 = smul.u32 %s26, 8
          %s405 = sadd.s32 %s404, 6
          %s406 = sld [smem:[#allocation3 + %s405]]
        $region44: #{_vad_pipeline.3} parent=15 // pred_fallthru
          _
        // Predicated region
        $region45: #{_vad_pipeline.3} parent=15 // pred_check
          %p407 = pneg %p274
        $region46: #{_vad_pipeline.3} parent=15 // pred_check_branch
          %409 = sbr.rel (%p407) target = $region48
        $region47: #{_vad_pipeline.3} parent=15 // pred_region
          %s410 = smul.u32 %s26, 8
          %s411 = sadd.s32 %s410, 7
          %s412 = sld [smem:[#allocation3 + %s411]]
          %p413 = scmp.lt.s32.totalorder %s412, 15
          %s414 = scalar_select %p413, %s412, 15
          %s415 = scalar_lea.vmem %s8, %s414
          %s416 = smul.u32 %s26, 8
          %s417 = sadd.s32 %s416, 7
          %s418 = sld [smem:[#allocation3 + %s417]]
        $region48: #{_vad_pipeline.3} parent=15 // pred_fallthru
          _
      $region16: #{_vad_pipeline.3} parent=5 // pred_fallthru
        _
      %p419 = scmp.le.s32.totalorder 1, %s26
      %p420 = scmp.lt.s32.totalorder %s26, 3
      %p421 = pnand %p419, %p420
      %p422 = pneg %p421
      // Predicated region
      $region49: #{_vad_pipeline.3} parent=5 // pred_check
        _
      $region50: #{_vad_pipeline.3} parent=5 // pred_check_branch
        %424 = sbr.rel (%p421) target = $region52
      $region51: #{_vad_pipeline.3} parent=5 // pred_region
        %s425 = ssub.s32 %s26, 1
        %s426 = smul.u32 %s31, 8
        %s427 = sld [smem:[#allocation3 + %s426]]
        %p428 = scmp.lt.s32.totalorder %s427, 15
        %s429 = scalar_select %p428, %s427, 15
        %s430 = scalar_lea.vmem %s1, %s429
        %p431 = pneg %p56
        %p432 = pneg %p53
        %s433 = smul.u32 %s31, 8
        %s434 = sadd.s32 %s433, 1
        %s435 = sld [smem:[#allocation3 + %s434]]
        %p436 = scmp.lt.s32.totalorder %s435, 15
        %s437 = scalar_select %p436, %s435, 15
        %s438 = scalar_lea.vmem %s2, %s437
        %p439 = pneg %p88
        %p440 = pneg %p85
        %s441 = smul.u32 %s31, 8
        %s442 = sadd.s32 %s441, 2
        %s443 = sld [smem:[#allocation3 + %s442]]
        %p444 = scmp.lt.s32.totalorder %s443, 15
        %s445 = scalar_select %p444, %s443, 15
        %s446 = scalar_lea.vmem %s3, %s445
        %p447 = pneg %p120
        %p448 = pneg %p117
        %s449 = smul.u32 %s31, 8
        %s450 = sadd.s32 %s449, 3
        %s451 = sld [smem:[#allocation3 + %s450]]
        %p452 = scmp.lt.s32.totalorder %s451, 15
        %s453 = scalar_select %p452, %s451, 15
        %s454 = scalar_lea.vmem %s4, %s453
        %p455 = pneg %p152
        %p456 = pneg %p149
        %s457 = smul.u32 %s31, 8
        %s458 = sadd.s32 %s457, 4
        %s459 = sld [smem:[#allocation3 + %s458]]
        %p460 = scmp.lt.s32.totalorder %s459, 15
        %s461 = scalar_select %p460, %s459, 15
        %s462 = scalar_lea.vmem %s5, %s461
        %p463 = pneg %p184
        %p464 = pneg %p181
        %s465 = smul.u32 %s31, 8
        %s466 = sadd.s32 %s465, 5
        %s467 = sld [smem:[#allocation3 + %s466]]
        %p468 = scmp.lt.s32.totalorder %s467, 15
        %s469 = scalar_select %p468, %s467, 15
        %s470 = scalar_lea.vmem %s6, %s469
        %p471 = pneg %p216
        %p472 = pneg %p213
        %s473 = smul.u32 %s31, 8
        %s474 = sadd.s32 %s473, 6
        %s475 = sld [smem:[#allocation3 + %s474]]
        %p476 = scmp.lt.s32.totalorder %s475, 15
        %s477 = scalar_select %p476, %s475, 15
        %s478 = scalar_lea.vmem %s7, %s477
        %p479 = pneg %p248
        %p480 = pneg %p245
        %s481 = smul.u32 %s31, 8
        %s482 = sadd.s32 %s481, 7
        %s483 = sld [smem:[#allocation3 + %s482]]
        %p484 = scmp.lt.s32.totalorder %s483, 15
        %s485 = scalar_select %p484, %s483, 15
        %s486 = scalar_lea.vmem %s8, %s485
        %p487 = pneg %p280
        %p488 = pneg %p277
        %p489 = pneg %p306
        %p490 = pneg %p303
        %s491 = sand.u32 %s293, 1
        %s492 = scalar_lea.sflag [#allocation5], %s491
        %s493 = sand.u32 %s293, 1
        %s494 = smul.addr %s493, 8
        %s495 = scalar_lea.vmem [#allocation4], %s494
        %s496 = smul.u32 %s31, 8
        %s497 = sld [smem:[#allocation3 + %s496]]
        %p498 = scmp.lt.s32.totalorder %s497, 15
        %s499 = scalar_select %p498, %s497, 15
        %s500 = scalar_lea.vmem %s1, %s499
        %s501 = smul.u32 %s31, 8
        %s502 = sld [smem:[#allocation3 + %s501]]
        %s503 = smul.u32 %s31, 8
        %s504 = sadd.s32 %s503, 1
        %s505 = sld [smem:[#allocation3 + %s504]]
        %p506 = scmp.lt.s32.totalorder %s505, 15
        %s507 = scalar_select %p506, %s505, 15
        %s508 = scalar_lea.vmem %s2, %s507
        %s509 = smul.u32 %s31, 8
        %s510 = sadd.s32 %s509, 1
        %s511 = sld [smem:[#allocation3 + %s510]]
        %s512 = smul.u32 %s31, 8
        %s513 = sadd.s32 %s512, 2
        %s514 = sld [smem:[#allocation3 + %s513]]
        %p515 = scmp.lt.s32.totalorder %s514, 15
        %s516 = scalar_select %p515, %s514, 15
        %s517 = scalar_lea.vmem %s3, %s516
        %s518 = smul.u32 %s31, 8
        %s519 = sadd.s32 %s518, 2
        %s520 = sld [smem:[#allocation3 + %s519]]
        %s521 = smul.u32 %s31, 8
        %s522 = sadd.s32 %s521, 3
        %s523 = sld [smem:[#allocation3 + %s522]]
        %p524 = scmp.lt.s32.totalorder %s523, 15
        %s525 = scalar_select %p524, %s523, 15
        %s526 = scalar_lea.vmem %s4, %s525
        %s527 = smul.u32 %s31, 8
        %s528 = sadd.s32 %s527, 3
        %s529 = sld [smem:[#allocation3 + %s528]]
        %s530 = smul.u32 %s31, 8
        %s531 = sadd.s32 %s530, 4
        %s532 = sld [smem:[#allocation3 + %s531]]
        %p533 = scmp.lt.s32.totalorder %s532, 15
        %s534 = scalar_select %p533, %s532, 15
        %s535 = scalar_lea.vmem %s5, %s534
        %s536 = smul.u32 %s31, 8
        %s537 = sadd.s32 %s536, 4
        %s538 = sld [smem:[#allocation3 + %s537]]
        %s539 = smul.u32 %s31, 8
        %s540 = sadd.s32 %s539, 5
        %s541 = sld [smem:[#allocation3 + %s540]]
        %p542 = scmp.lt.s32.totalorder %s541, 15
        %s543 = scalar_select %p542, %s541, 15
        %s544 = scalar_lea.vmem %s6, %s543
        %s545 = smul.u32 %s31, 8
        %s546 = sadd.s32 %s545, 5
        %s547 = sld [smem:[#allocation3 + %s546]]
        %s548 = smul.u32 %s31, 8
        %s549 = sadd.s32 %s548, 6
        %s550 = sld [smem:[#allocation3 + %s549]]
        %p551 = scmp.lt.s32.totalorder %s550, 15
        %s552 = scalar_select %p551, %s550, 15
        %s553 = scalar_lea.vmem %s7, %s552
        %s554 = smul.u32 %s31, 8
        %s555 = sadd.s32 %s554, 6
        %s556 = sld [smem:[#allocation3 + %s555]]
        %s557 = smul.u32 %s31, 8
        %s558 = sadd.s32 %s557, 7
        %s559 = sld [smem:[#allocation3 + %s558]]
        %p560 = scmp.lt.s32.totalorder %s559, 15
        %s561 = scalar_select %p560, %s559, 15
        %s562 = scalar_lea.vmem %s8, %s561
        %s563 = smul.u32 %s31, 8
        %s564 = sadd.s32 %s563, 7
        %s565 = sld [smem:[#allocation3 + %s564]]
        %v566 = vld [vmem:[%s500] sm:$0x1]
        %v567 = vld [vmem:[%s508] sm:$0x1]
        %v568 = vld [vmem:[%s517] sm:$0x1]
        %v569 = vld [vmem:[%s526] sm:$0x1]
        %v570 = vld [vmem:[%s535] sm:$0x1]
        %v571 = vld [vmem:[%s544] sm:$0x1]
        %v572 = vld [vmem:[%s553] sm:$0x1]
        %v573 = vld [vmem:[%s562] sm:$0x1]
        %v575 = vperm.slane %v567, 0
        %v578 = vperm.slane %v568, 0
        %v581 = vperm.slane %v569, 0
        %v584 = vperm.slane %v570, 0
        %v587 = vperm.slane %v571, 0
        %v590 = vperm.slane %v572, 0
        %v593 = vperm.slane %v573, 0
        %vm595 = vcmask 1040384
        %v596 = vsel %vm595, %v566, %v575
        %vm597 = vcmask 1041408
        %v598 = vsel %vm597, %v596, %v578
        %vm599 = vcmask 1042432
        %v600 = vsel %vm599, %v598, %v581
        %vm601 = vcmask 1043456
        %v602 = vsel %vm601, %v600, %v584
        %vm603 = vcmask 1044480
        %v604 = vsel %vm603, %v602, %v587
        %vm605 = vcmask 1045504
        %v606 = vsel %vm605, %v604, %v590
        %vm607 = vcmask 1046528
        %v608 = vsel %vm607, %v606, %v593
        %609 = vst [vmem:[%s495] sm:$0xff] %v608
        %s610 = sand.u32 %s293, 1
        %s611 = scalar_lea.sflag [#allocation5], %s610
        %s612 = sand.u32 %s293, 1
        %s613 = smul.addr %s612, 8
        %s614 = scalar_lea.vmem [#allocation4], %s613
        // Predicated region
        $region53: #{_vad_pipeline.3} parent=51 // pred_check
          %p615 = pneg %p303
        $region54: #{_vad_pipeline.3} parent=51 // pred_check_branch
          %617 = sbr.rel (%p615) target = $region56
        $region55: #{_vad_pipeline.3} parent=51 // pred_region
          %619 = vsyncadd %s611, 0
          %s620 = smul.addr %s31, 8
          %s621 = scalar_lea.hbm %s9, %s620
          %s623 = sshll.u32 %s614, 4
          %s624 = int_to_ptr.vmem [resolvable:$true] %s623
          %s625 = sshll.u32 %s621, 4
          %s626 = int_to_ptr.hbm [resolvable:$true] %s625
          %628 = dma.vmem_to_hbm [thread:$0]  %s624, 128, %s626, %s611
        $region56: #{_vad_pipeline.3} parent=51 // pred_fallthru
          _
      $region52: #{_vad_pipeline.3} parent=5 // pred_fallthru
        _
      %p629 = scmp.le.s32.totalorder 2, %s26
      // Predicated region
      $region57: #{_vad_pipeline.3} parent=5 // pred_check
        %p630 = pneg %p629
      $region58: #{_vad_pipeline.3} parent=5 // pred_check_branch
        %632 = sbr.rel (%p630) target = $region60
      $region59: #{_vad_pipeline.3} parent=5 // pred_region
        %s633 = ssub.s32 %s26, 2
        // Predicated region
        $region61: #{_vad_pipeline.3} parent=59 // pred_check
          %p634 = pneg %p309
        $region62: #{_vad_pipeline.3} parent=59 // pred_check_branch
          %636 = sbr.rel (%p634) target = $region64
        $region63: #{_vad_pipeline.3} parent=59 // pred_region
          %s637 = sand.u32 %s294, 1
          %s638 = scalar_lea.sflag [#allocation5], %s637
          %s639 = sand.u32 %s294, 1
          %s640 = smul.addr %s639, 8
          %s641 = scalar_lea.vmem [#allocation4], %s640
          %643 = dma.done %s638, 128
        $region64: #{_vad_pipeline.3} parent=59 // pred_fallthru
          _
      $region60: #{_vad_pipeline.3} parent=5 // pred_fallthru
        _
    $region6: #{_vad_pipeline.3} parent=1 // loop_footer
      %s30 = sadd.s32 1, %s26
    $region7: #{_vad_pipeline.3} parent=1 // loop_footer_branch
      %25 = sbr.rel target = $region3
    $region8: #{_vad_pipeline.3} parent=1 // loop_exit
      _
    %644 = vsyncpa [#allocation5], 1
    %s645 = scalar_lea.sflag [#allocation5], 1
    %646 = vsyncpa %s645, 1

// kernel: _vad_pipeline.2
$region0: #{_vad_pipeline.2}
  #allocation0 [shape = 'u32[]', space=smem, size = 0x4, offset = 0x4, fixed_abs, tag = 'smem constant byte address 0x4 - core index']
  #allocation1 [shape = 'u32[72,128]{1,0:T(1,128)}', space=vmem, size = 0x9000, scoped, tag = 'internal scratch']
  %s0 = inlined_call_operand.vmem [shape: bf16[128,128], index: 0, kind: input, shape index: {}]
  %s1 = inlined_call_operand.vmem [shape: bf16[8,128], index: 1, kind: input, shape index: {}]
  %s2 = inlined_call_operand.vmem [shape: s32[1,128], index: 2, kind: output, shape index: {}]
  %s3 = sld [smem:[#allocation0]]
  $region18: #{_vad_pipeline.2} parent=0
    _
  %s5 = ssub.s32 1, %s3
  %s6 = scalar_select 0, %s5, %s3
  // Predicated region
  $region2: #{_vad_pipeline.2} parent=0 // pred_check
    _
  $region3: #{_vad_pipeline.2} parent=0 // pred_check_branch
    %8 = sbr.rel (0) target = $region5
  $region4: #{_vad_pipeline.2} parent=0 // pred_region
    _
  $region5: #{_vad_pipeline.2} parent=0 // pred_fallthru
    _
  // Predicated region
  $region6: #{_vad_pipeline.2} parent=0 // pred_check
    _
  $region7: #{_vad_pipeline.2} parent=0 // pred_check_branch
    %10 = sbr.rel (0) target = $region9
  $region8: #{_vad_pipeline.2} parent=0 // pred_region
    _
  $region9: #{_vad_pipeline.2} parent=0 // pred_fallthru
    _
  %v11 = vld [vmem:[%s1] sm:$0xf]
  %v12 = vld [vmem:[%s0] sm:$0xf]
  %v13 = vld [vmem:[%s0 + $0x4] sm:$0xf]
  %v14 = vld [vmem:[%s0 + $0x8] sm:$0xf]
  %v15 = vld [vmem:[%s0 + $0xc] sm:$0xf]
  %v16 = vld [vmem:[%s0 + $0x10] sm:$0xf]
  %v17 = vld [vmem:[%s0 + $0x14] sm:$0xf]
  %v18 = vld [vmem:[%s0 + $0x18] sm:$0xf]
  %v19 = vld [vmem:[%s0 + $0x1c] sm:$0xf]
  %v20 = vld [vmem:[%s0 + $0x20] sm:$0xf]
  %v21 = vld [vmem:[%s0 + $0x24] sm:$0xf]
  %v22 = vld [vmem:[%s0 + $0x28] sm:$0xf]
  %v23 = vld [vmem:[%s0 + $0x2c] sm:$0xf]
  %v24 = vld [vmem:[%s0 + $0x30] sm:$0xf]
  %v25 = vld [vmem:[%s0 + $0x34] sm:$0xf]
  %v26 = vld [vmem:[%s0 + $0x38] sm:$0xf]
  %v27 = vld [vmem:[%s0 + $0x3c] sm:$0xf]
  %v44 = vunpack.c.l.b16 %v12
  %v45 = vunpack.c.l.b16 %v13
  %v46 = vunpack.c.l.b16 %v14
  %v47 = vunpack.c.l.b16 %v15
  %v48 = vunpack.c.l.b16 %v16
  %v49 = vunpack.c.l.b16 %v17
  %v50 = vunpack.c.l.b16 %v18
  %v51 = vunpack.c.l.b16 %v19
  %v52 = vunpack.c.l.b16 %v20
  %v53 = vunpack.c.l.b16 %v21
  %v54 = vunpack.c.l.b16 %v22
  %v55 = vunpack.c.l.b16 %v23
  %v56 = vunpack.c.l.b16 %v24
  %v57 = vunpack.c.l.b16 %v25
  %v58 = vunpack.c.l.b16 %v26
  %v59 = vunpack.c.l.b16 %v27
  %v60 = vpack.c.b16 %v45, %v44
  %v61 = vpack.c.b16 %v47, %v46
  %v62 = vpack.c.b16 %v49, %v48
  %v63 = vpack.c.b16 %v51, %v50
  %v64 = vpack.c.b16 %v53, %v52
  %v65 = vpack.c.b16 %v55, %v54
  %v66 = vpack.c.b16 %v57, %v56
  %v67 = vpack.c.b16 %v59, %v58
  %76 = vmatpush.bf16.xpose.msra.mxu0 %v67
  %77 = vmatpush.bf16.xpose.msra.mxu0 %v66
  %78 = vmatpush.bf16.xpose.msra.mxu0 %v65
  %79 = vmatpush.bf16.xpose.msra.mxu0 %v64
  %80 = vmatpush.bf16.xpose.msra.mxu0 %v63
  %81 = vmatpush.bf16.xpose.msra.mxu0 %v62
  %82 = vmatpush.bf16.xpose.msra.mxu0 %v61
  %83 = vmatpush.bf16.xpose.msra.mxu0 %v60
  %84 = vmatmul.bf16.gmra.mxu0 %v11
  %v85 = vpop.f32.mrf.mxu0
  %v86 = vadd.f32 0.0, %v85
  %v87 = vpop.f32.mrf.mxu0
  %88 = vdwg.mxu0
  %vm89 = vcmp.gt.f32.partialorder %v86, 0.5
  %v90 = vsel %vm89, 1, 0
  %91 = vst [vmem:[%s2] sm:$0x1] %v90
  // Predicated region
  $region10: #{_vad_pipeline.2} parent=0 // pred_check
    _
  $region11: #{_vad_pipeline.2} parent=0 // pred_check_branch
    %93 = sbr.rel (0) target = $region13
  $region12: #{_vad_pipeline.2} parent=0 // pred_region
    _
  $region13: #{_vad_pipeline.2} parent=0 // pred_fallthru
    _
  // Predicated region
  $region14: #{_vad_pipeline.2} parent=0 // pred_check
    _
  $region15: #{_vad_pipeline.2} parent=0 // pred_check_branch
    %95 = sbr.rel (0) target = $region17
  $region16: #{_vad_pipeline.2} parent=0 // pred_region
    _
  $region17: #{_vad_pipeline.2} parent=0 // pred_fallthru
    _

</llo_original>
